<compile_context>
chip_gen: v5e
topology: v5e:2x2
jax: 0.10.0
libtpu: 0.0.40
codegen_flags: <defaults>
</compile_context>

<pallas_src>
import functools

import jax
import jax.numpy as jnp
from jax.experimental import pallas as pl
from jax.experimental.pallas import tpu as pltpu


_LANES = 128

# (per-operand block budget bytes, scoped-VMEM limit bytes)
_SMALL_BUDGETS = (4 * 1024 * 1024, 32 * 1024 * 1024)   # v7x (64 MiB VMEM) / unknown
_BIG_BUDGETS = (8 * 1024 * 1024, 64 * 1024 * 1024)     # v5e / v6e (128 MiB VMEM)

_BUDGETS = None          # resolved lazily (overridable for testing)
_BUFFERED_OK = None      # lazily probed: is BlockSpec(pipeline_mode=Buffered) usable?


def _get_budgets():
    """Pick per-generation block / VMEM budgets from the attached TPU."""
    global _BUDGETS
    if _BUDGETS is None:
        vmem = None
        try:
            vmem = getattr(pltpu.get_tpu_info(), "vmem_capacity_bytes", None)
        except Exception:
            vmem = None
        if vmem is not None and vmem >= 100 * 1024 * 1024:
            _BUDGETS = _BIG_BUDGETS        # v5e / v6e: plenty of VMEM
        else:
            _BUDGETS = _SMALL_BUDGETS      # v7x or unknown: stay conservative
    return _BUDGETS


def _probe_kernel(x_ref, o_ref):
    o_ref[...] = x_ref[...]


def _buffered_supported():
    """One-time probe: does a single-buffered BlockSpec compile and run?"""
    global _BUFFERED_OK
    if _BUFFERED_OK is None:
        try:
            x = jnp.zeros((8, _LANES), jnp.float32)
            f = pl.pallas_call(
                _probe_kernel,
                out_shape=jax.ShapeDtypeStruct((8, _LANES), jnp.float32),
                grid=(1,),
                in_specs=[pl.BlockSpec((8, _LANES), lambda i: (0, 0),
                                       pipeline_mode=pl.Buffered(1))],
                out_specs=pl.BlockSpec((8, _LANES), lambda i: (0, 0)),
            )
            jax.block_until_ready(f(x))
            _BUFFERED_OK = True
        except Exception:
            _BUFFERED_OK = False
    return _BUFFERED_OK


def _sublane_multiple(dtype):
    # f32 -> 8, bf16 -> 16, int8/fp8 -> 32 (packed sublane constraint).
    itemsize = jnp.dtype(dtype).itemsize
    return max(8, 8 * (4 // max(1, itemsize)))


def _add_window_kernel(x_ref, e_ref, o_ref):
    # (TS, TD) window of one batch slab + the matching (TS, TD) table window.
    o_ref[...] = (x_ref[...] + e_ref[...]).astype(o_ref.dtype)


def _make_batch_slab_kernel(seq_len):
    def kernel(x_ref, e_ref, o_ref):
        # x_ref: (k, S, D) -- k whole batch slabs.
        # e_ref: whole positional table, resident in VMEM; rows [0, S) apply.
        e = e_ref[pl.ds(0, seq_len), :]
        o_ref[...] = (x_ref[...] + e[None, :, :]).astype(o_ref.dtype)
    return kernel


@functools.partial(jax.jit, static_argnames=("batched", "donate_x"))
def positional_encoding_forward(x, emb_table, batched=True, donate_x=False):
    """Adds learned positional embeddings to x.

    x:          [B, S, D] if batched else [S, D]
    emb_table:  [num_positions, D]

    donate_x=True aliases x to the output inside the pallas_call.  Only set it
    when the caller actually donates x (e.g. jax.jit(..., donate_argnums=0) at
    a higher level); aliasing a non-donated parameter makes XLA insert a full
    protective copy of x, which is pure overhead for this streaming add.
    """
    x3 = x if batched else x[None, ...]
    B, S, D = x3.shape
    P, D_e = emb_table.shape
    if D_e != D:
        raise ValueError(f"d_model mismatch: x has {D}, emb_table has {D_e}")
    if S > P:
        raise ValueError(f"seq len {S} exceeds num_positions {P}")

    block_bytes, vmem_limit = _get_budgets()
    itemsize = max(jnp.dtype(x3.dtype).itemsize,
                   jnp.dtype(emb_table.dtype).itemsize)
    sub = max(_sublane_multiple(x3.dtype), _sublane_multiple(emb_table.dtype))
    slab_bytes = S * D * itemsize
    out_shape = jax.ShapeDtypeStruct((B, S, D), x3.dtype)

    if slab_bytes <= block_bytes:
        # ---- Path A: per-batch slab fits a block ----------------------------
        # Collapse across the batch: each grid step adds the table to k whole
        # [S, D] slabs while the table stays resident in VMEM (constant block
        # index -> DMA'd from HBM exactly once for the whole kernel).
        # Block last-two dims equal the full (S, D) extents, so this is legal
        # for any S / D (masked stores when D % 128 != 0, which is still
        # cheaper than any relayout).
        e_op = emb_table if P * D * itemsize <= block_bytes else emb_table[:S]
        kernel = _make_batch_slab_kernel(S)
        k = max(1, min(block_bytes // max(1, slab_bytes), B))
        if B >= 2:
            k = min(k, max(1, B // 2))     # >= 2 grid steps -> both v7x TCs busy
        grid = (pl.cdiv(B, k),)
        x_spec = pl.BlockSpec((k, S, D), lambda i: (i, 0, 0))
        o_spec = pl.BlockSpec((k, S, D), lambda i: (i, 0, 0))
        e_block, e_imap = (e_op.shape[0], D), (lambda i: (0, 0))
        if _buffered_supported():
            # Constant block index: one buffer is enough; frees VMEM headroom.
            e_spec = pl.BlockSpec(e_block, e_imap, pipeline_mode=pl.Buffered(1))
        else:
            e_spec = pl.BlockSpec(e_block, e_imap)
        semantics = ("parallel",)
    else:
        # ---- Path B: large per-batch slab -> tile rows (and lanes if needed).
        # Native layout, batch innermost so the table tile's block index is
        # unchanged across batches and is only re-fetched per row tile.
        e_op = emb_table                   # rows windowed straight out of the table
        kernel = _add_window_kernel
        max_rows = block_bytes // (D * itemsize)
        if max_rows >= sub:
            ts = (max_rows // sub) * sub   # < S since the slab exceeds the budget
            grid = (pl.cdiv(S, ts), B)
            x_spec = pl.BlockSpec((pl.Squeezed(), ts, D), lambda s, b: (b, s, 0))
            o_spec = pl.BlockSpec((pl.Squeezed(), ts, D), lambda s, b: (b, s, 0))
            e_spec = pl.BlockSpec((ts, D), lambda s, b: (s, 0))
            semantics = ("parallel", "parallel")
        else:
            # Huge-D guard: even 8 rows x D exceed the budget -> tile lanes too.
            ts = sub
            if D % _LANES == 0:
                td = max(_LANES,
                         (block_bytes // (sub * itemsize)) // _LANES * _LANES)
            else:
                td = D                     # pathological non-128-aligned huge D
                vmem_limit = max(vmem_limit, 8 * sub * D * itemsize)
            grid = (pl.cdiv(S, ts), pl.cdiv(D, td), B)
            x_spec = pl.BlockSpec((pl.Squeezed(), ts, td), lambda s, d, b: (b, s, d))
            o_spec = pl.BlockSpec((pl.Squeezed(), ts, td), lambda s, d, b: (b, s, d))
            e_spec = pl.BlockSpec((ts, td), lambda s, d, b: (s, d))
            semantics = ("parallel", "parallel", "parallel")

    out = pl.pallas_call(
        kernel,
        out_shape=out_shape,
        grid=grid,
        in_specs=[x_spec, e_spec],
        out_specs=o_spec,
        compiler_params=pltpu.CompilerParams(
            dimension_semantics=semantics,
            vmem_limit_bytes=vmem_limit,
        ),
        input_output_aliases=({0: 0} if donate_x else {}),
    )(x3, e_op)

    return out if batched else out[0]


if __name__ == "__main__":
    # Module config (matches nn.Embedding(num_positions, d_model) shapes).
    d_model = 32
    num_positions = 20
    batch, seq = 2, 8

    key = jax.random.PRNGKey(0)
    k_emb, k_x, k_xu, k_e2, k_x2 = jax.random.split(key, 5)

    # nn.Embedding default init is N(0, 1).
    emb_table = jax.random.normal(k_emb, (num_positions, d_model), jnp.float32)
    x_batched = jax.random.normal(k_x, (batch, seq, d_model), jnp.float32)
    x_unb = jax.random.normal(k_xu, (seq, d_model), jnp.float32)

    ref_b = x_batched + emb_table[:seq][None, :, :]
    ref_u = x_unb + emb_table[:seq]

    # Batched: [batch, seq, d_model]  (Path A: collapsed batch blocks).
    out_b = jax.block_until_ready(
        positional_encoding_forward(x_batched, emb_table, batched=True))
    assert out_b.shape == x_batched.shape
    assert jnp.allclose(out_b, ref_b, atol=1e-6), "batched mismatch"

    # Unbatched: [seq, d_model].
    out_u = jax.block_until_ready(
        positional_encoding_forward(x_unb, emb_table, batched=False))
    assert out_u.shape == x_unb.shape
    assert jnp.allclose(out_u, ref_u, atol=1e-6), "unbatched mismatch"

    # Exercise the large-slab tiled path (Path B) by shrinking the block
    # budget so S*D*4 no longer fits a single block.
    emb_big = jax.random.normal(k_e2, (40, 128), jnp.float32)
    x_big = jax.random.normal(k_x2, (2, 32, 128), jnp.float32)
    ref_big = x_big + emb_big[:32][None, :, :]
    _BUDGETS = (8 * 1024, 32 * 1024 * 1024)
    try:
        out_big = jax.block_until_ready(
            positional_encoding_forward(x_big, emb_big, batched=True))
    finally:
        _BUDGETS = None
    assert out_big.shape == x_big.shape
    assert jnp.allclose(out_big, ref_big, atol=1e-6), "tiled-path mismatch"

    print("KERNEL_OK")
</pallas_src>

<mosaic_0001>
module attributes {stable_mosaic.version = 11 : i64} {
  func.func @kernel(%arg0: i32, %arg1: memref<1x8x32xf32, #tpu.memory_space<vmem>>, %arg2: memref<20x32xf32, #tpu.memory_space<vmem>>, %arg3: memref<1x8x32xf32, #tpu.memory_space<vmem>>) attributes {dimension_semantics = [#tpu.dimension_semantics<parallel>], iteration_bounds = array<i64: 2>, scalar_prefetch = 0 : i64, scratch_operands = 0 : i64, tpu.core_type = #tpu.core_type<tc>, window_params = [{transform_indices = @transform_0, window_bounds = array<i64: 1, 8, 32>}, {pipeline_mode = #tpu.pipeline_mode<synchronous>, transform_indices = @transform_1, window_bounds = array<i64: 20, 32>}, {transform_indices = @transform_2, window_bounds = array<i64: 1, 8, 32>}]} {
    %c0 = arith.constant 0 : index
    %c0_0 = arith.constant 0 : index
    %0 = vector.load %arg2[%c0, %c0_0] : memref<20x32xf32, #tpu.memory_space<vmem>>, vector<8x32xf32>
    %c0_1 = arith.constant 0 : index
    %c0_2 = arith.constant 0 : index
    %c0_3 = arith.constant 0 : index
    %1 = vector.load %arg1[%c0_1, %c0_2, %c0_3] : memref<1x8x32xf32, #tpu.memory_space<vmem>>, vector<1x8x32xf32>
    %2 = vector.shape_cast %0 : vector<8x32xf32> to vector<1x8x32xf32>
    %3 = arith.addf %1, %2 : vector<1x8x32xf32>
    %c0_4 = arith.constant 0 : index
    %c0_5 = arith.constant 0 : index
    %c0_6 = arith.constant 0 : index
    %4 = vector.load %arg3[%c0_4, %c0_5, %c0_6] : memref<1x8x32xf32, #tpu.memory_space<vmem>>, vector<1x8x32xf32>
    tpu.vector_store %arg3[%c0_4, %c0_5, %c0_6], %3 {strides = array<i32>} : memref<1x8x32xf32, #tpu.memory_space<vmem>>, vector<1x8x32xf32>,
    return
  }
  func.func @transform_0(%arg0: i32) -> (i32, i32, i32) {
    %c0_i32 = arith.constant 0 : i32
    %c0_i32_0 = arith.constant 0 : i32
    %c0_i32_1 = arith.constant 0 : i32
    return %arg0, %c0_i32, %c0_i32_0 : i32, i32, i32
  }
  func.func @transform_1(%arg0: i32) -> (i32, i32) {
    %c0_i32 = arith.constant 0 : i32
    %c0_i32_0 = arith.constant 0 : i32
    %c0_i32_1 = arith.constant 0 : i32
    return %c0_i32, %c0_i32_0 : i32, i32
  }
  func.func @transform_2(%arg0: i32) -> (i32, i32, i32) {
    %c0_i32 = arith.constant 0 : i32
    %c0_i32_0 = arith.constant 0 : i32
    %c0_i32_1 = arith.constant 0 : i32
    return %arg0, %c0_i32, %c0_i32_0 : i32, i32, i32
  }
}

</mosaic_0001>

<llo_original>
// kernel: positional_encoding_forward.1
$region0: #{positional_encoding_forward.1}
  #allocation0 [shape = 'u32[]', space=smem, size = 0x4, offset = 0x4, fixed_abs, tag = 'smem constant byte address 0x4 - core index']
  #allocation1 [shape = 'u32[72,128]{1,0:T(1,128)}', space=vmem, size = 0x9000, scoped, tag = 'internal scratch']
  %s0 = inlined_call_operand.hbm [shape: f32[2,8,32], index: 0, kind: input, shape index: {}]
  %s1 = inlined_call_operand.hbm [shape: f32[20,32], index: 1, kind: input, shape index: {}]
  %s2 = inlined_call_operand.hbm [shape: f32[2,8,32], index: 2, kind: output, shape index: {}]
  %s3 = sld [smem:[#allocation0]]
  $region49: #{positional_encoding_forward.1} parent=0
    _
  %s5 = ssub.s32 1, %s3
  %s6 = scalar_select 0, %s5, %s3
  $region1: #{positional_encoding_forward.1} parent=0
    #allocation2 [shape = 'u8[8192]{0}', space=vmem, size = 0x2000, scoped, tag = 'input window, operand 0']
    #allocation3 [shape = 's32[2]{0}', space=sflag, size = 0x8, scoped, tag = 'scoped memory for positional_encoding_forward.1']
    #allocation4 [shape = 's32[2]{0}', space=sflag, size = 0x8, scoped, tag = 'scoped memory for positional_encoding_forward.1']
    #allocation5 [shape = 'u8[12288]{0}', space=vmem, size = 0x3000, scoped, tag = 'input window, operand 1, single buffered']
    #allocation6 [shape = 's32[1]{0}', space=sflag, size = 0x4, scoped, tag = 'scoped memory for positional_encoding_forward.1']
    #allocation7 [shape = 'u8[8192]{0}', space=vmem, size = 0x2000, scoped, tag = 'output window, operand 0']
    %7 = vsyncpa [#allocation3], 0
    %s8 = scalar_lea.sflag [#allocation3], 1
    %9 = vsyncpa %s8, 0
    %10 = vsyncpa [#allocation6], 0
    %11 = vsyncpa [#allocation4], 0
    %s12 = scalar_lea.sflag [#allocation4], 1
    %13 = vsyncpa %s12, 0
    loop: start=0, step=1, limit=4
    $region2: #{positional_encoding_forward.1} parent=1 // loop_pre_header
      _
    $region3: #{positional_encoding_forward.1} parent=1 // loop_header
      %s15 = sphi 0, %s19
      %p16 = scmp.ge.s32.totalorder %s15, 4
      %s25 = sphi 0, %s27
      %s28 = sphi 0, %s25
      %s29 = sphi 0, %s28
      %s45 = sphi 0, %s29
      %s49 = sphi 0, %s49
      %s51 = sphi 0, %s49
      %s52 = sphi 0, %s51
      %s66 = sphi 0, %s52
      %s72 = sphi 0, %s74
      %s75 = sphi 0, %s72
      %s76 = sphi 0, %s75
      %s92 = sphi 0, %s76
    $region4: #{positional_encoding_forward.1} parent=1 // loop_header_branch
      %18 = sbr.rel (%p16) target = $region8
    $region5: #{positional_encoding_forward.1} parent=1 // loop_body
      %s20 = ssub.s32 %s15, 1
      %s21 = ssub.s32 %s15, 2
      %s22 = sadd.s32 %s15, 1
      %s23 = ssub.s32 %s15, %s22
      %p24 = scmp.eq.s32.totalorder %s23, 0
      %s26 = sadd.s32 %s25, 1
      %s27 = scalar_select %p24, %s25, %s26
      %p30 = pneg %p24
      %p31 = scmp.eq.s32.totalorder %s15, 1
      %p32 = por %p30, %p31
      %p33 = scmp.ne.s32.totalorder %s25, %s28
      %p34 = scmp.eq.s32.totalorder %s15, 0
      %p35 = por %p33, %p34
      %p36 = scmp.ne.s32.totalorder %s25, %s28
      %p37 = scmp.eq.s32.totalorder %s20, 1
      %p38 = por %p36, %p37
      %p39 = scmp.ne.s32.totalorder %s28, %s29
      %p40 = scmp.eq.s32.totalorder %s20, 0
      %p41 = por %p39, %p40
      %p42 = scmp.ne.s32.totalorder %s28, %s29
      %p43 = scmp.eq.s32.totalorder %s21, 1
      %p44 = por %p42, %p43
      %p46 = scmp.ne.s32.totalorder %s29, %s45
      %p47 = scmp.eq.s32.totalorder %s21, 0
      %p48 = por %p46, %p47
      %s50 = sadd.s32 %s49, 1
      %p53 = scmp.eq.s32.totalorder %s15, 1
      %p54 = scmp.ne.s32.totalorder %s49, %s51
      %p55 = scmp.eq.s32.totalorder %s15, 0
      %p56 = por %p54, %p55
      %p57 = scmp.ne.s32.totalorder %s49, %s51
      %p58 = scmp.eq.s32.totalorder %s20, 1
      %p59 = por %p57, %p58
      %p60 = scmp.ne.s32.totalorder %s51, %s52
      %p61 = scmp.eq.s32.totalorder %s20, 0
      %p62 = por %p60, %p61
      %p63 = scmp.ne.s32.totalorder %s51, %s52
      %p64 = scmp.eq.s32.totalorder %s21, 1
      %p65 = por %p63, %p64
      %p67 = scmp.ne.s32.totalorder %s52, %s66
      %p68 = scmp.eq.s32.totalorder %s21, 0
      %p69 = por %p67, %p68
      %s70 = ssub.s32 %s15, %s22
      %p71 = scmp.eq.s32.totalorder %s70, 0
      %s73 = sadd.s32 %s72, 1
      %s74 = scalar_select %p71, %s72, %s73
      %p77 = pneg %p71
      %p78 = scmp.eq.s32.totalorder %s15, 1
      %p79 = por %p77, %p78
      %p80 = scmp.ne.s32.totalorder %s72, %s75
      %p81 = scmp.eq.s32.totalorder %s15, 0
      %p82 = por %p80, %p81
      %p83 = scmp.ne.s32.totalorder %s72, %s75
      %p84 = scmp.eq.s32.totalorder %s20, 1
      %p85 = por %p83, %p84
      %p86 = scmp.ne.s32.totalorder %s75, %s76
      %p87 = scmp.eq.s32.totalorder %s20, 0
      %p88 = por %p86, %p87
      %p89 = scmp.ne.s32.totalorder %s75, %s76
      %p90 = scmp.eq.s32.totalorder %s21, 1
      %p91 = por %p89, %p90
      %p93 = scmp.ne.s32.totalorder %s76, %s92
      %p94 = scmp.eq.s32.totalorder %s21, 0
      %p95 = por %p93, %p94
      %p96 = scmp.le.s32.totalorder 1, %s15
      %p97 = scmp.lt.s32.totalorder %s15, 3
      %p98 = pnand %p96, %p97
      %p99 = pneg %p98
      // Predicated region
      $region9: #{positional_encoding_forward.1} parent=5 // pred_check
        _
      $region10: #{positional_encoding_forward.1} parent=5 // pred_check_branch
        %101 = sbr.rel (%p98) target = $region12
      $region11: #{positional_encoding_forward.1} parent=5 // pred_region
        %s102 = ssub.s32 %s15, 1
        // Predicated region
        $region13: #{positional_encoding_forward.1} parent=11 // pred_check
          %p103 = pneg %p62
        $region14: #{positional_encoding_forward.1} parent=11 // pred_check_branch
          %105 = sbr.rel (%p103) target = $region16
        $region15: #{positional_encoding_forward.1} parent=11 // pred_region
          %107 = vsyncadd [#allocation6], 0
          %s108 = sshll.u32 %s1, 4
          %s109 = int_to_ptr.hbm [resolvable:$true] %s108
          %s110 = sshll.u32 [#allocation5], 4
          %s111 = int_to_ptr.vmem [resolvable:$true] %s110
          %116 = dma.hbm_to_vmem [thread:$0]  %s109, 384, %s111, [#allocation6], 128, 128, 8
        $region16: #{positional_encoding_forward.1} parent=11 // pred_fallthru
          _
      $region12: #{positional_encoding_forward.1} parent=5 // pred_fallthru
        _
      %p117 = scmp.lt.s32.totalorder %s15, 2
      // Predicated region
      $region17: #{positional_encoding_forward.1} parent=5 // pred_check
        %p118 = pneg %p117
      $region18: #{positional_encoding_forward.1} parent=5 // pred_check_branch
        %120 = sbr.rel (%p118) target = $region20
      $region19: #{positional_encoding_forward.1} parent=5 // pred_region
        // Predicated region
        $region21: #{positional_encoding_forward.1} parent=19 // pred_check
          %p121 = pneg %p35
        $region22: #{positional_encoding_forward.1} parent=19 // pred_check_branch
          %123 = sbr.rel (%p121) target = $region24
        $region23: #{positional_encoding_forward.1} parent=19 // pred_region
          %s124 = sand.u32 %s25, 1
          %s125 = scalar_lea.sflag [#allocation3], %s124
          %s126 = sand.u32 %s25, 1
          %s127 = smul.addr %s126, 8
          %s128 = scalar_lea.vmem [#allocation2], %s127
          %130 = vsyncadd %s125, 0
          %s131 = smul.addr %s15, 8
          %s132 = scalar_lea.hbm %s0, %s131
          %s134 = sshll.u32 %s132, 4
          %s135 = int_to_ptr.hbm [resolvable:$true] %s134
          %s136 = sshll.u32 %s128, 4
          %s137 = int_to_ptr.vmem [resolvable:$true] %s136
          %139 = dma.hbm_to_vmem [thread:$0]  %s135, 128, %s137, %s125
        $region24: #{positional_encoding_forward.1} parent=19 // pred_fallthru
          _
      $region20: #{positional_encoding_forward.1} parent=5 // pred_fallthru
        _
      %p140 = scmp.le.s32.totalorder 1, %s15
      %p141 = scmp.lt.s32.totalorder %s15, 3
      %p142 = pnand %p140, %p141
      %p143 = pneg %p142
      // Predicated region
      $region25: #{positional_encoding_forward.1} parent=5 // pred_check
        _
      $region26: #{positional_encoding_forward.1} parent=5 // pred_check_branch
        %145 = sbr.rel (%p142) target = $region28
      $region27: #{positional_encoding_forward.1} parent=5 // pred_region
        %s146 = ssub.s32 %s15, 1
        %s147 = sand.u32 %s28, 1
        %s148 = scalar_lea.sflag [#allocation3], %s147
        %s149 = sand.u32 %s28, 1
        %s150 = smul.addr %s149, 8
        %s151 = scalar_lea.vmem [#allocation2], %s150
        // Predicated region
        $region29: #{positional_encoding_forward.1} parent=27 // pred_check
          %p152 = pneg %p41
        $region30: #{positional_encoding_forward.1} parent=27 // pred_check_branch
          %154 = sbr.rel (%p152) target = $region32
        $region31: #{positional_encoding_forward.1} parent=27 // pred_region
          %156 = dma.done %s148, 128
        $region32: #{positional_encoding_forward.1} parent=27 // pred_fallthru
          _
        // Predicated region
        $region33: #{positional_encoding_forward.1} parent=27 // pred_check
          %p157 = pneg %p62
        $region34: #{positional_encoding_forward.1} parent=27 // pred_check_branch
          %159 = sbr.rel (%p157) target = $region36
        $region35: #{positional_encoding_forward.1} parent=27 // pred_region
          %161 = dma.done [#allocation6], 384
        $region36: #{positional_encoding_forward.1} parent=27 // pred_fallthru
          _
        %s162 = sand.u32 %s28, 1
        %s163 = scalar_lea.sflag [#allocation3], %s162
        %s164 = sand.u32 %s28, 1
        %s165 = smul.addr %s164, 8
        %s166 = scalar_lea.vmem [#allocation2], %s165
        %p167 = pneg %p41
        %p168 = pneg %p38
        %p169 = pneg %p62
        %p170 = pneg %p59
        %p171 = pneg %p88
        %p172 = pneg %p85
        %s173 = sand.u32 %s75, 1
        %s174 = scalar_lea.sflag [#allocation4], %s173
        %s175 = sand.u32 %s75, 1
        %s176 = smul.addr %s175, 8
        %s177 = scalar_lea.vmem [#allocation7], %s176
        %v178 = vld [vmem:[#allocation5] sm:$0xff]
        %v179 = vld [vmem:[%s151] sm:$0xff]
        %v180 = vadd.f32 %v179, %v178
        %vm181 = vcmask 261120
        %182 = vst.msk [vmem:[%s177] sm:$0xff] %vm181, %v180
        %s183 = sand.u32 %s75, 1
        %s184 = scalar_lea.sflag [#allocation4], %s183
        %s185 = sand.u32 %s75, 1
        %s186 = smul.addr %s185, 8
        %s187 = scalar_lea.vmem [#allocation7], %s186
        // Predicated region
        $region37: #{positional_encoding_forward.1} parent=27 // pred_check
          %p188 = pneg %p85
        $region38: #{positional_encoding_forward.1} parent=27 // pred_check_branch
          %190 = sbr.rel (%p188) target = $region40
        $region39: #{positional_encoding_forward.1} parent=27 // pred_region
          %192 = vsyncadd %s184, 0
          %s193 = smul.addr %s20, 8
          %s194 = scalar_lea.hbm %s2, %s193
          %s196 = sshll.u32 %s187, 4
          %s197 = int_to_ptr.vmem [resolvable:$true] %s196
          %s198 = sshll.u32 %s194, 4
          %s199 = int_to_ptr.hbm [resolvable:$true] %s198
          %201 = dma.vmem_to_hbm [thread:$0]  %s197, 128, %s199, %s184
        $region40: #{positional_encoding_forward.1} parent=27 // pred_fallthru
          _
      $region28: #{positional_encoding_forward.1} parent=5 // pred_fallthru
        _
      %p202 = scmp.le.s32.totalorder 2, %s15
      // Predicated region
      $region41: #{positional_encoding_forward.1} parent=5 // pred_check
        %p203 = pneg %p202
      $region42: #{positional_encoding_forward.1} parent=5 // pred_check_branch
        %205 = sbr.rel (%p203) target = $region44
      $region43: #{positional_encoding_forward.1} parent=5 // pred_region
        %s206 = ssub.s32 %s15, 2
        // Predicated region
        $region45: #{positional_encoding_forward.1} parent=43 // pred_check
          %p207 = pneg %p91
        $region46: #{positional_encoding_forward.1} parent=43 // pred_check_branch
          %209 = sbr.rel (%p207) target = $region48
        $region47: #{positional_encoding_forward.1} parent=43 // pred_region
          %s210 = sand.u32 %s76, 1
          %s211 = scalar_lea.sflag [#allocation4], %s210
          %s212 = sand.u32 %s76, 1
          %s213 = smul.addr %s212, 8
          %s214 = scalar_lea.vmem [#allocation7], %s213
          %216 = dma.done %s211, 128
        $region48: #{positional_encoding_forward.1} parent=43 // pred_fallthru
          _
      $region44: #{positional_encoding_forward.1} parent=5 // pred_fallthru
        _
    $region6: #{positional_encoding_forward.1} parent=1 // loop_footer
      %s19 = sadd.s32 1, %s15
    $region7: #{positional_encoding_forward.1} parent=1 // loop_footer_branch
      %14 = sbr.rel target = $region3
    $region8: #{positional_encoding_forward.1} parent=1 // loop_exit
      _
    %217 = vsyncpa [#allocation3], 1
    %s218 = scalar_lea.sflag [#allocation3], 1
    %219 = vsyncpa %s218, 1
    %220 = vsyncpa [#allocation6], 1
    %221 = vsyncpa [#allocation4], 1
    %s222 = scalar_lea.sflag [#allocation4], 1
    %223 = vsyncpa %s222, 1

</llo_original>
